<compile_context>
chip_gen: v7x
topology: tpu7x:2x2x1
jax: 0.10.0
libtpu: 0.0.40
codegen_flags: <defaults>
</compile_context>

<pallas_src>
import functools

import jax
import jax.numpy as jnp
from jax.experimental import pallas as pl
from jax.experimental.pallas import tpu as pltpu


def _twostep_kernel(tok_ref,            # [S, 2E, TB]   concatenated token features (batch on lanes)
                    w_attn_ref, b_attn_ref,   # [2E, 2E], [2E, 1]
                    w_in_ref, b_in_ref,       # [H, 2E],  [H, 1]
                    w_hid_ref, b_hid_ref,     # [L, H, H],[L, H, 1]
                    w_out_ref, b_out_ref,     # [1, H],   [1, 1]
                    out_ref,                  # [1, TB]
                    *, n_layers: int, seq_len: int):
    # --- sentence_transformer surrogate: mean pooling over the sequence axis -----
    # tokens arrive as [S, 2E, TB]; reducing axis 0 is just S VPU adds of 2D slabs.
    tok = tok_ref[...].astype(jnp.float32)
    x_t = jnp.sum(tok, axis=0) * (1.0 / seq_len)          # [2E, TB]  == concat(emb1, emb2)^T

    # --- AttnFCRegression: softmax attention gate over features ------------------
    logits = jnp.dot(w_attn_ref[...], x_t,
                     preferred_element_type=jnp.float32) + b_attn_ref[...]   # [2E, TB]
    logits = logits - jnp.max(logits, axis=0, keepdims=True)
    ex = jnp.exp(logits)
    inv_denom = pl.reciprocal(jnp.sum(ex, axis=0, keepdims=True), approx=True)
    x_t = x_t * (ex * inv_denom)                          # gated features [2E, TB]

    # --- input projection + ReLU --------------------------------------------------
    h = jnp.dot(w_in_ref[...], x_t,
                preferred_element_type=jnp.float32) + b_in_ref[...]          # [H, TB]
    h = jnp.maximum(h, 0.0)

    # --- n_layers hidden FC layers + ReLU (dropout = identity in eval) -----------
    for l in range(n_layers):
        h = jnp.dot(w_hid_ref[l], h,
                    preferred_element_type=jnp.float32) + b_hid_ref[l]
        h = jnp.maximum(h, 0.0)

    # --- final regression head -> [1, TB] (lane-dense, unmasked store) -----------
    out_ref[...] = jnp.dot(w_out_ref[...], h,
                           preferred_element_type=jnp.float32) + b_out_ref[...]


def twostep_trf_prediction(tok1, tok2, params, *, n_layers: int, batch_tile: int = 128):
    """tok1/tok2: [B, S, E] token features of the two texts. Returns [B, 1] predictions."""
    B, S, E = tok1.shape
    F = 2 * E
    H = params["w_in"].shape[0]

    # ---- wrapper-side layout plumbing (handled by XLA, not the kernel) ----------
    # concat features, put batch on the minor (lane) axis, pad batch to the tile.
    tok = jnp.concatenate([tok1, tok2], axis=-1)          # [B, S, 2E]
    tok = jnp.transpose(tok, (1, 2, 0))                   # [S, 2E, B]
    b_pad = batch_tile * pl.cdiv(B, batch_tile)
    if b_pad != B:
        tok = jnp.pad(tok, ((0, 0), (0, 0), (0, b_pad - B)))

    # NOTE: for long sequences / large E, shrink batch_tile so the double-buffered
    # (S, 2E, TB) token block stays well inside v7x's smaller (64 MiB) VMEM.
    kernel = functools.partial(_twostep_kernel, n_layers=n_layers, seq_len=S)
    const = lambda *shape_idx: (lambda i: shape_idx)       # weight blocks stay resident

    out_t = pl.pallas_call(
        kernel,
        out_shape=jax.ShapeDtypeStruct((1, b_pad), jnp.float32),
        grid_spec=pltpu.PrefetchScalarGridSpec(
            num_scalar_prefetch=0,
            grid=(b_pad // batch_tile,),
            in_specs=[
                pl.BlockSpec((S, F, batch_tile), lambda i: (0, 0, i)),   # tokens: tiled over batch
                pl.BlockSpec((F, F), const(0, 0)),                       # w_attn
                pl.BlockSpec((F, 1), const(0, 0)),                       # b_attn
                pl.BlockSpec((H, F), const(0, 0)),                       # w_in
                pl.BlockSpec((H, 1), const(0, 0)),                       # b_in
                pl.BlockSpec((n_layers, H, H), const(0, 0, 0)),          # w_hid
                pl.BlockSpec((n_layers, H, 1), const(0, 0, 0)),          # b_hid
                pl.BlockSpec((1, H), const(0, 0)),                       # w_out
                pl.BlockSpec((1, 1), const(0, 0)),                       # b_out
            ],
            out_specs=pl.BlockSpec((1, batch_tile), lambda i: (0, i)),
        ),
        compiler_params=pltpu.CompilerParams(dimension_semantics=("parallel",)),
    )(tok,
      params["w_attn"], params["b_attn"],
      params["w_in"], params["b_in"],
      params["w_hid"], params["b_hid"],
      params["w_out"], params["b_out"])

    return out_t[0, :B].reshape(B, 1)


def init_params(key, embedding_size: int, n_layers: int, h_size: int):
    """Weights stored [out_dim, in_dim] (nn.Linear.weight layout) for the transposed
    batch-on-lanes compute: h^T = W @ x^T + b, with biases shaped [out_dim, 1]."""
    in_size = 2 * embedding_size
    ks = jax.random.split(key, 4)
    scale = 0.1
    return {
        "w_attn": scale * jax.random.normal(ks[0], (in_size, in_size), jnp.float32),
        "b_attn": jnp.zeros((in_size, 1), jnp.float32),
        "w_in":   scale * jax.random.normal(ks[1], (h_size, in_size), jnp.float32),
        "b_in":   jnp.zeros((h_size, 1), jnp.float32),
        "w_hid":  scale * jax.random.normal(ks[2], (n_layers, h_size, h_size), jnp.float32),
        "b_hid":  jnp.zeros((n_layers, h_size, 1), jnp.float32),
        "w_out":  scale * jax.random.normal(ks[3], (1, h_size), jnp.float32),
        "b_out":  jnp.zeros((1, 1), jnp.float32),
    }


if __name__ == "__main__":
    # small shapes consistent with the module's forward
    B, S, E = 8, 8, 32          # batch, seq, embedding_size
    N_LAYERS, H = 2, 32         # AttnFCRegression n_layers, h_size

    root = jax.random.PRNGKey(0)
    k_tok1, k_tok2, k_params = jax.random.split(root, 3)

    tok1 = jax.random.normal(k_tok1, (B, S, E), jnp.float32)  # sentence_features[0]
    tok2 = jax.random.normal(k_tok2, (B, S, E), jnp.float32)  # sentence_features[1]
    params = init_params(k_params, E, N_LAYERS, H)

    preds = twostep_trf_prediction(tok1, tok2, params, n_layers=N_LAYERS)
    jax.block_until_ready(preds)
    assert preds.shape == (B, 1)
    assert bool(jnp.all(jnp.isfinite(preds)))
    print("KERNEL_OK")
</pallas_src>

<mosaic_0001>
module attributes {stable_mosaic.version = 11 : i64} {
  func.func @_twostep_kernel(%arg0: i32, %arg1: memref<8x64x128xf32, #tpu.memory_space<vmem>>, %arg2: memref<64x64xf32, #tpu.memory_space<vmem>>, %arg3: memref<64x1xf32, #tpu.memory_space<vmem>>, %arg4: memref<32x64xf32, #tpu.memory_space<vmem>>, %arg5: memref<32x1xf32, #tpu.memory_space<vmem>>, %arg6: memref<2x32x32xf32, #tpu.memory_space<vmem>>, %arg7: memref<2x32x1xf32, #tpu.memory_space<vmem>>, %arg8: memref<1x32xf32, #tpu.memory_space<vmem>>, %arg9: memref<1x1xf32, #tpu.memory_space<vmem>>, %arg10: memref<1x128xf32, #tpu.memory_space<vmem>>) attributes {dimension_semantics = [#tpu.dimension_semantics<parallel>], iteration_bounds = array<i64: 1>, scalar_prefetch = 0 : i64, scratch_operands = 0 : i64, tpu.core_type = #tpu.core_type<tc>, window_params = [{transform_indices = @transform_0, window_bounds = array<i64: 8, 64, 128>}, {pipeline_mode = #tpu.pipeline_mode<synchronous>, transform_indices = @transform_1, window_bounds = array<i64: 64, 64>}, {pipeline_mode = #tpu.pipeline_mode<synchronous>, transform_indices = @transform_2, window_bounds = array<i64: 64, 1>}, {pipeline_mode = #tpu.pipeline_mode<synchronous>, transform_indices = @transform_3, window_bounds = array<i64: 32, 64>}, {pipeline_mode = #tpu.pipeline_mode<synchronous>, transform_indices = @transform_4, window_bounds = array<i64: 32, 1>}, {pipeline_mode = #tpu.pipeline_mode<synchronous>, transform_indices = @transform_5, window_bounds = array<i64: 2, 32, 32>}, {pipeline_mode = #tpu.pipeline_mode<synchronous>, transform_indices = @transform_6, window_bounds = array<i64: 2, 32, 1>}, {pipeline_mode = #tpu.pipeline_mode<synchronous>, transform_indices = @transform_7, window_bounds = array<i64: 1, 32>}, {pipeline_mode = #tpu.pipeline_mode<synchronous>, transform_indices = @transform_8, window_bounds = array<i64: 1, 1>}, {transform_indices = @transform_9, window_bounds = array<i64: 1, 128>}]} {
    %c0 = arith.constant 0 : index
    %c0_0 = arith.constant 0 : index
    %c0_1 = arith.constant 0 : index
    %0 = vector.load %arg1[%c0, %c0_0, %c0_1] : memref<8x64x128xf32, #tpu.memory_space<vmem>>, vector<8x64x128xf32>
    %cst = arith.constant dense<0.000000e+00> : vector<64x128xf32>
    %1 = vector.multi_reduction <add>, %0, %cst [0] : vector<8x64x128xf32> to vector<64x128xf32>
    %cst_2 = arith.constant 1.250000e-01 : f32
    %2 = vector.broadcast %cst_2 : f32 to vector<64x128xf32>
    %3 = arith.mulf %1, %2 : vector<64x128xf32>
    %c0_3 = arith.constant 0 : index
    %c0_4 = arith.constant 0 : index
    %4 = vector.load %arg2[%c0_3, %c0_4] : memref<64x64xf32, #tpu.memory_space<vmem>>, vector<64x64xf32>
    %cst_5 = arith.constant dense<0.000000e+00> : vector<64x128xf32>
    %5 = tpu.matmul %4, %3, %cst_5 {dimension_numbers = #tpu.dot_dimension_numbers<[1], [0], [0], [1], [0, 0, 1, 1], [], []>} : vector<64x64xf32>, vector<64x128xf32>, vector<64x128xf32> -> vector<64x128xf32>
    %c0_6 = arith.constant 0 : index
    %c0_7 = arith.constant 0 : index
    %6 = vector.load %arg3[%c0_6, %c0_7] : memref<64x1xf32, #tpu.memory_space<vmem>>, vector<64x1xf32>
    %7 = vector.broadcast %6 : vector<64x1xf32> to vector<64x128xf32>
    %8 = arith.addf %5, %7 : vector<64x128xf32>
    %cst_8 = arith.constant dense<0xFF800000> : vector<128xf32>
    %9 = vector.multi_reduction <maximumf>, %8, %cst_8 [0] : vector<64x128xf32> to vector<128xf32>
    %10 = vector.shape_cast %9 : vector<128xf32> to vector<1x128xf32>
    %11 = vector.broadcast %10 : vector<1x128xf32> to vector<64x128xf32>
    %12 = arith.subf %8, %11 : vector<64x128xf32>
    %13 = math.exp %12 : vector<64x128xf32>
    %cst_9 = arith.constant dense<0.000000e+00> : vector<128xf32>
    %14 = vector.multi_reduction <add>, %13, %cst_9 [0] : vector<64x128xf32> to vector<128xf32>
    %15 = vector.shape_cast %14 : vector<128xf32> to vector<1x128xf32>
    %16 = tpu.reciprocal %15 {approx = true} : vector<1x128xf32> -> vector<1x128xf32>
    %17 = vector.broadcast %16 : vector<1x128xf32> to vector<64x128xf32>
    %18 = arith.mulf %13, %17 : vector<64x128xf32>
    %19 = arith.mulf %3, %18 : vector<64x128xf32>
    %c0_10 = arith.constant 0 : index
    %c0_11 = arith.constant 0 : index
    %20 = vector.load %arg4[%c0_10, %c0_11] : memref<32x64xf32, #tpu.memory_space<vmem>>, vector<32x64xf32>
    %cst_12 = arith.constant dense<0.000000e+00> : vector<32x128xf32>
    %21 = tpu.matmul %20, %19, %cst_12 {dimension_numbers = #tpu.dot_dimension_numbers<[1], [0], [0], [1], [0, 0, 1, 1], [], []>} : vector<32x64xf32>, vector<64x128xf32>, vector<32x128xf32> -> vector<32x128xf32>
    %c0_13 = arith.constant 0 : index
    %c0_14 = arith.constant 0 : index
    %22 = vector.load %arg5[%c0_13, %c0_14] : memref<32x1xf32, #tpu.memory_space<vmem>>, vector<32x1xf32>
    %23 = vector.broadcast %22 : vector<32x1xf32> to vector<32x128xf32>
    %24 = arith.addf %21, %23 : vector<32x128xf32>
    %cst_15 = arith.constant 0.000000e+00 : f32
    %25 = vector.broadcast %cst_15 : f32 to vector<32x128xf32>
    %26 = arith.maximumf %24, %25 : vector<32x128xf32>
    %c0_16 = arith.constant 0 : index
    %c0_17 = arith.constant 0 : index
    %c0_18 = arith.constant 0 : index
    %27 = vector.load %arg6[%c0_16, %c0_17, %c0_18] : memref<2x32x32xf32, #tpu.memory_space<vmem>>, vector<1x32x32xf32>
    %28 = vector.shape_cast %27 : vector<1x32x32xf32> to vector<32x32xf32>
    %cst_19 = arith.constant dense<0.000000e+00> : vector<32x128xf32>
    %29 = tpu.matmul %28, %26, %cst_19 {dimension_numbers = #tpu.dot_dimension_numbers<[1], [0], [0], [1], [0, 0, 1, 1], [], []>} : vector<32x32xf32>, vector<32x128xf32>, vector<32x128xf32> -> vector<32x128xf32>
    %c0_20 = arith.constant 0 : index
    %c0_21 = arith.constant 0 : index
    %c0_22 = arith.constant 0 : index
    %30 = vector.load %arg7[%c0_20, %c0_21, %c0_22] : memref<2x32x1xf32, #tpu.memory_space<vmem>>, vector<1x32x1xf32>
    %31 = vector.shape_cast %30 : vector<1x32x1xf32> to vector<32x1xf32>
    %32 = vector.broadcast %31 : vector<32x1xf32> to vector<32x128xf32>
    %33 = arith.addf %29, %32 : vector<32x128xf32>
    %cst_23 = arith.constant 0.000000e+00 : f32
    %34 = vector.broadcast %cst_23 : f32 to vector<32x128xf32>
    %35 = arith.maximumf %33, %34 : vector<32x128xf32>
    %c1 = arith.constant 1 : index
    %c0_24 = arith.constant 0 : index
    %c0_25 = arith.constant 0 : index
    %36 = vector.load %arg6[%c1, %c0_24, %c0_25] : memref<2x32x32xf32, #tpu.memory_space<vmem>>, vector<1x32x32xf32>
    %37 = vector.shape_cast %36 : vector<1x32x32xf32> to vector<32x32xf32>
    %cst_26 = arith.constant dense<0.000000e+00> : vector<32x128xf32>
    %38 = tpu.matmul %37, %35, %cst_26 {dimension_numbers = #tpu.dot_dimension_numbers<[1], [0], [0], [1], [0, 0, 1, 1], [], []>} : vector<32x32xf32>, vector<32x128xf32>, vector<32x128xf32> -> vector<32x128xf32>
    %c1_27 = arith.constant 1 : index
    %c0_28 = arith.constant 0 : index
    %c0_29 = arith.constant 0 : index
    %39 = vector.load %arg7[%c1_27, %c0_28, %c0_29] : memref<2x32x1xf32, #tpu.memory_space<vmem>>, vector<1x32x1xf32>
    %40 = vector.shape_cast %39 : vector<1x32x1xf32> to vector<32x1xf32>
    %41 = vector.broadcast %40 : vector<32x1xf32> to vector<32x128xf32>
    %42 = arith.addf %38, %41 : vector<32x128xf32>
    %cst_30 = arith.constant 0.000000e+00 : f32
    %43 = vector.broadcast %cst_30 : f32 to vector<32x128xf32>
    %44 = arith.maximumf %42, %43 : vector<32x128xf32>
    %c0_31 = arith.constant 0 : index
    %c0_32 = arith.constant 0 : index
    %45 = vector.load %arg8[%c0_31, %c0_32] : memref<1x32xf32, #tpu.memory_space<vmem>>, vector<1x32xf32>
    %cst_33 = arith.constant dense<0.000000e+00> : vector<1x128xf32>
    %46 = tpu.matmul %45, %44, %cst_33 {dimension_numbers = #tpu.dot_dimension_numbers<[1], [0], [0], [1], [0, 0, 1, 1], [], []>} : vector<1x32xf32>, vector<32x128xf32>, vector<1x128xf32> -> vector<1x128xf32>
    %c0_34 = arith.constant 0 : index
    %c0_35 = arith.constant 0 : index
    %47 = vector.load %arg9[%c0_34, %c0_35] : memref<1x1xf32, #tpu.memory_space<vmem>>, vector<1x1xf32>
    %48 = vector.broadcast %47 : vector<1x1xf32> to vector<1x128xf32>
    %49 = arith.addf %46, %48 : vector<1x128xf32>
    %c0_36 = arith.constant 0 : index
    %c0_37 = arith.constant 0 : index
    %50 = vector.load %arg10[%c0_36, %c0_37] : memref<1x128xf32, #tpu.memory_space<vmem>>, vector<1x128xf32>
    tpu.vector_store %arg10[%c0_36, %c0_37], %49 {strides = array<i32>} : memref<1x128xf32, #tpu.memory_space<vmem>>, vector<1x128xf32>,
    return
  }
  func.func @transform_0(%arg0: i32) -> (i32, i32, i32) {
    %c0_i32 = arith.constant 0 : i32
    %c0_i32_0 = arith.constant 0 : i32
    %c0_i32_1 = arith.constant 0 : i32
    return %c0_i32, %c0_i32_0, %arg0 : i32, i32, i32
  }
  func.func @transform_1(%arg0: i32) -> (i32, i32) {
    %c0_i32 = arith.constant 0 : i32
    %c0_i32_0 = arith.constant 0 : i32
    %c0_i32_1 = arith.constant 0 : i32
    return %c0_i32, %c0_i32_0 : i32, i32
  }
  func.func @transform_2(%arg0: i32) -> (i32, i32) {
    %c0_i32 = arith.constant 0 : i32
    %c0_i32_0 = arith.constant 0 : i32
    %c0_i32_1 = arith.constant 0 : i32
    return %c0_i32, %c0_i32_0 : i32, i32
  }
  func.func @transform_3(%arg0: i32) -> (i32, i32) {
    %c0_i32 = arith.constant 0 : i32
    %c0_i32_0 = arith.constant 0 : i32
    %c0_i32_1 = arith.constant 0 : i32
    return %c0_i32, %c0_i32_0 : i32, i32
  }
  func.func @transform_4(%arg0: i32) -> (i32, i32) {
    %c0_i32 = arith.constant 0 : i32
    %c0_i32_0 = arith.constant 0 : i32
    %c0_i32_1 = arith.constant 0 : i32
    return %c0_i32, %c0_i32_0 : i32, i32
  }
  func.func @transform_5(%arg0: i32) -> (i32, i32, i32) {
    %c0_i32 = arith.constant 0 : i32
    %c0_i32_0 = arith.constant 0 : i32
    %c0_i32_1 = arith.constant 0 : i32
    %c0_i32_2 = arith.constant 0 : i32
    return %c0_i32, %c0_i32_0, %c0_i32_1 : i32, i32, i32
  }
  func.func @transform_6(%arg0: i32) -> (i32, i32, i32) {
    %c0_i32 = arith.constant 0 : i32
    %c0_i32_0 = arith.constant 0 : i32
    %c0_i32_1 = arith.constant 0 : i32
    %c0_i32_2 = arith.constant 0 : i32
    return %c0_i32, %c0_i32_0, %c0_i32_1 : i32, i32, i32
  }
  func.func @transform_7(%arg0: i32) -> (i32, i32) {
    %c0_i32 = arith.constant 0 : i32
    %c0_i32_0 = arith.constant 0 : i32
    %c0_i32_1 = arith.constant 0 : i32
    return %c0_i32, %c0_i32_0 : i32, i32
  }
  func.func @transform_8(%arg0: i32) -> (i32, i32) {
    %c0_i32 = arith.constant 0 : i32
    %c0_i32_0 = arith.constant 0 : i32
    %c0_i32_1 = arith.constant 0 : i32
    return %c0_i32, %c0_i32_0 : i32, i32
  }
  func.func @transform_9(%arg0: i32) -> (i32, i32) {
    %c0_i32 = arith.constant 0 : i32
    %c0_i32_0 = arith.constant 0 : i32
    return %c0_i32, %arg0 : i32, i32
  }
}

</mosaic_0001>

<llo_original>
// kernel: tpu_custom_call.1
$region0: #{tpu_custom_call.1}
  #allocation0 [shape = 'u32[]', space=smem, size = 0x4, offset = 0x4, fixed_abs, tag = 'smem constant byte address 0x4 - core index']
  #allocation1 [shape = 'u32[144,128]{1,0:T(1,128)}', space=vmem, size = 0x12000, scoped, tag = 'internal scratch']
  #allocation2 [shape = 'f32[1,1]{1,0:T(1,128)S(1)}', space=vmem, size = 0x200, scoped, tag = 'scoped memory for tpu_custom_call.1']
  %s0 = inlined_call_operand.hbm [shape: f32[8,64,128], index: 0, kind: input, shape index: {}]
  %s1 = inlined_call_operand.vmem [shape: f32[64,64], index: 1, kind: input, shape index: {}]
  %s2 = inlined_call_operand.vmem [shape: f32[64,1], index: 2, kind: input, shape index: {}]
  %s3 = inlined_call_operand.vmem [shape: f32[32,64], index: 3, kind: input, shape index: {}]
  %s4 = inlined_call_operand.vmem [shape: f32[32,1], index: 4, kind: input, shape index: {}]
  %s5 = inlined_call_operand.vmem [shape: f32[2,32,32], index: 5, kind: input, shape index: {}]
  %s6 = inlined_call_operand.vmem [shape: f32[2,32,1], index: 6, kind: input, shape index: {}]
  %s7 = inlined_call_operand.vmem [shape: f32[1,32], index: 7, kind: input, shape index: {}]
  %s8 = inlined_call_operand.<no memory space> [shape: f32[1,1], index: 8, kind: input, shape index: {}]
  %s9 = inlined_call_operand.hbm [shape: f32[1,128], index: 9, kind: output, shape index: {}]
  %s10 = sld [smem:[#allocation0]]
  $region50: #{tpu_custom_call.1} parent=0
    _
  %s12 = ssub.s32 1, %s10
  %s13 = scalar_select 0, %s12, %s10
  %v14 = vstv %s8
  %15 = vst [vmem:[#allocation2] sm:$0x1] %v14
  $region1: #{tpu_custom_call.1} parent=0
    #allocation3 [shape = 'u8[262144]{0}', space=vmem, size = 0x40000, scoped, tag = 'input window, operand 0, single buffered']
    #allocation4 [shape = 's32[1]{0}', space=sflag, size = 0x4, scoped, tag = 'scoped memory for tpu_custom_call.1']
    #allocation5 [shape = 's32[1]{0}', space=sflag, size = 0x4, scoped, tag = 'scoped memory for tpu_custom_call.1']
    #allocation6 [shape = 'u8[512]{0}', space=vmem, size = 0x400, scoped, tag = 'output window, operand 0, single buffered']
    %16 = vsyncpa [#allocation4], 0
    %17 = vsyncpa [#allocation5], 0
    // Predicated region
    $region2: #{tpu_custom_call.1} parent=1 // pred_check
      _
    $region3: #{tpu_custom_call.1} parent=1 // pred_check_branch
      %19 = sbr.rel (0) target = $region5
    $region4: #{tpu_custom_call.1} parent=1 // pred_region
      %s21 = ssub.s32 8192, 8192
      %22 = vsyncadd [#allocation4], %s21
      %s23 = sshll.u32 [#allocation3], 4
      %s24 = int_to_ptr.vmem [resolvable:$true] %s23
      %29 = dma.hbm_to_vmem [thread:$0]  %s0, 8192, %s24, [#allocation4], 128, 128, 8
    $region5: #{tpu_custom_call.1} parent=1 // pred_fallthru
      _
    // Predicated region
    $region6: #{tpu_custom_call.1} parent=1 // pred_check
      _
    $region7: #{tpu_custom_call.1} parent=1 // pred_check_branch
      %31 = sbr.rel (0) target = $region9
    $region8: #{tpu_custom_call.1} parent=1 // pred_region
      _
    $region9: #{tpu_custom_call.1} parent=1 // pred_fallthru
      _
    // Predicated region
    $region10: #{tpu_custom_call.1} parent=1 // pred_check
      _
    $region11: #{tpu_custom_call.1} parent=1 // pred_check_branch
      %33 = sbr.rel (0) target = $region13
    $region12: #{tpu_custom_call.1} parent=1 // pred_region
      _
    $region13: #{tpu_custom_call.1} parent=1 // pred_fallthru
      _
    // Predicated region
    $region14: #{tpu_custom_call.1} parent=1 // pred_check
      _
    $region15: #{tpu_custom_call.1} parent=1 // pred_check_branch
      %35 = sbr.rel (0) target = $region17
    $region16: #{tpu_custom_call.1} parent=1 // pred_region
      _
    $region17: #{tpu_custom_call.1} parent=1 // pred_fallthru
      _
    // Predicated region
    $region18: #{tpu_custom_call.1} parent=1 // pred_check
      _
    $region19: #{tpu_custom_call.1} parent=1 // pred_check_branch
      %37 = sbr.rel (0) target = $region21
    $region20: #{tpu_custom_call.1} parent=1 // pred_region
      _
    $region21: #{tpu_custom_call.1} parent=1 // pred_fallthru
      _
    // Predicated region
    $region22: #{tpu_custom_call.1} parent=1 // pred_check
      _
    $region23: #{tpu_custom_call.1} parent=1 // pred_check_branch
      %39 = sbr.rel (0) target = $region25
    $region24: #{tpu_custom_call.1} parent=1 // pred_region
      _
    $region25: #{tpu_custom_call.1} parent=1 // pred_fallthru
      _
    // Predicated region
    $region26: #{tpu_custom_call.1} parent=1 // pred_check
      _
    $region27: #{tpu_custom_call.1} parent=1 // pred_check_branch
      %41 = sbr.rel (0) target = $region29
    $region28: #{tpu_custom_call.1} parent=1 // pred_region
      _
    $region29: #{tpu_custom_call.1} parent=1 // pred_fallthru
      _
    // Predicated region
    $region30: #{tpu_custom_call.1} parent=1 // pred_check
      _
    $region31: #{tpu_custom_call.1} parent=1 // pred_check_branch
      %43 = sbr.rel (0) target = $region33
    $region32: #{tpu_custom_call.1} parent=1 // pred_region
      _
    $region33: #{tpu_custom_call.1} parent=1 // pred_fallthru
      _
    // Predicated region
    $region34: #{tpu_custom_call.1} parent=1 // pred_check
      _
    $region35: #{tpu_custom_call.1} parent=1 // pred_check_branch
      %45 = sbr.rel (0) target = $region37
    $region36: #{tpu_custom_call.1} parent=1 // pred_region
      _
    $region37: #{tpu_custom_call.1} parent=1 // pred_fallthru
      _
    // Predicated region
    $region38: #{tpu_custom_call.1} parent=1 // pred_check
      _
    $region39: #{tpu_custom_call.1} parent=1 // pred_check_branch
      %47 = sbr.rel (0) target = $region41
    $region40: #{tpu_custom_call.1} parent=1 // pred_region
      %48 = dma.done [#allocation4], 8192
    $region41: #{tpu_custom_call.1} parent=1 // pred_fallthru
      _
    %v49 = vld [vmem:[#allocation3] sm:$0xff]
    %v50 = vld [vmem:[#allocation3 + $0x8] sm:$0xff]
    %v51 = vld [vmem:[#allocation3 + $0x10] sm:$0xff]
    %v52 = vld [vmem:[#allocation3 + $0x18] sm:$0xff]
    %v53 = vld [vmem:[#allocation3 + $0x20] sm:$0xff]
    %v54 = vld [vmem:[#allocation3 + $0x28] sm:$0xff]
    %v55 = vld [vmem:[#allocation3 + $0x30] sm:$0xff]
    %v56 = vld [vmem:[#allocation3 + $0x38] sm:$0xff]
    %v57 = vld [vmem:[#allocation3 + $0x40] sm:$0xff]
    %v58 = vld [vmem:[#allocation3 + $0x48] sm:$0xff]
    %v59 = vld [vmem:[#allocation3 + $0x50] sm:$0xff]
    %v60 = vld [vmem:[#allocation3 + $0x58] sm:$0xff]
    %v61 = vld [vmem:[#allocation3 + $0x60] sm:$0xff]
    %v62 = vld [vmem:[#allocation3 + $0x68] sm:$0xff]
    %v63 = vld [vmem:[#allocation3 + $0x70] sm:$0xff]
    %v64 = vld [vmem:[#allocation3 + $0x78] sm:$0xff]
    %v65 = vld [vmem:[#allocation3 + $0x80] sm:$0xff]
    %v66 = vld [vmem:[#allocation3 + $0x88] sm:$0xff]
    %v67 = vld [vmem:[#allocation3 + $0x90] sm:$0xff]
    %v68 = vld [vmem:[#allocation3 + $0x98] sm:$0xff]
    %v69 = vld [vmem:[#allocation3 + $0xa0] sm:$0xff]
    %v70 = vld [vmem:[#allocation3 + $0xa8] sm:$0xff]
    %v71 = vld [vmem:[#allocation3 + $0xb0] sm:$0xff]
    %v72 = vld [vmem:[#allocation3 + $0xb8] sm:$0xff]
    %v73 = vld [vmem:[#allocation3 + $0xc0] sm:$0xff]
    %v74 = vld [vmem:[#allocation3 + $0xc8] sm:$0xff]
    %v75 = vld [vmem:[#allocation3 + $0xd0] sm:$0xff]
    %v76 = vld [vmem:[#allocation3 + $0xd8] sm:$0xff]
    %v77 = vld [vmem:[#allocation3 + $0xe0] sm:$0xff]
    %v78 = vld [vmem:[#allocation3 + $0xe8] sm:$0xff]
    %v79 = vld [vmem:[#allocation3 + $0xf0] sm:$0xff]
    %v80 = vld [vmem:[#allocation3 + $0xf8] sm:$0xff]
    %v81 = vld [vmem:[#allocation3 + $0x100] sm:$0xff]
    %v82 = vld [vmem:[#allocation3 + $0x108] sm:$0xff]
    %v83 = vld [vmem:[#allocation3 + $0x110] sm:$0xff]
    %v84 = vld [vmem:[#allocation3 + $0x118] sm:$0xff]
    %v85 = vld [vmem:[#allocation3 + $0x120] sm:$0xff]
    %v86 = vld [vmem:[#allocation3 + $0x128] sm:$0xff]
    %v87 = vld [vmem:[#allocation3 + $0x130] sm:$0xff]
    %v88 = vld [vmem:[#allocation3 + $0x138] sm:$0xff]
    %v89 = vld [vmem:[#allocation3 + $0x140] sm:$0xff]
    %v90 = vld [vmem:[#allocation3 + $0x148] sm:$0xff]
    %v91 = vld [vmem:[#allocation3 + $0x150] sm:$0xff]
    %v92 = vld [vmem:[#allocation3 + $0x158] sm:$0xff]
    %v93 = vld [vmem:[#allocation3 + $0x160] sm:$0xff]
    %v94 = vld [vmem:[#allocation3 + $0x168] sm:$0xff]
    %v95 = vld [vmem:[#allocation3 + $0x170] sm:$0xff]
    %v96 = vld [vmem:[#allocation3 + $0x178] sm:$0xff]
    %v97 = vld [vmem:[#allocation3 + $0x180] sm:$0xff]
    %v98 = vld [vmem:[#allocation3 + $0x188] sm:$0xff]
    %v99 = vld [vmem:[#allocation3 + $0x190] sm:$0xff]
    %v100 = vld [vmem:[#allocation3 + $0x198] sm:$0xff]
    %v101 = vld [vmem:[#allocation3 + $0x1a0] sm:$0xff]
    %v102 = vld [vmem:[#allocation3 + $0x1a8] sm:$0xff]
    %v103 = vld [vmem:[#allocation3 + $0x1b0] sm:$0xff]
    %v104 = vld [vmem:[#allocation3 + $0x1b8] sm:$0xff]
    %v105 = vld [vmem:[#allocation3 + $0x1c0] sm:$0xff]
    %v106 = vld [vmem:[#allocation3 + $0x1c8] sm:$0xff]
    %v107 = vld [vmem:[#allocation3 + $0x1d0] sm:$0xff]
    %v108 = vld [vmem:[#allocation3 + $0x1d8] sm:$0xff]
    %v109 = vld [vmem:[#allocation3 + $0x1e0] sm:$0xff]
    %v110 = vld [vmem:[#allocation3 + $0x1e8] sm:$0xff]
    %v111 = vld [vmem:[#allocation3 + $0x1f0] sm:$0xff]
    %v112 = vld [vmem:[#allocation3 + $0x1f8] sm:$0xff]
    %v113 = vadd.f32 %v49, %v57
    %v114 = vadd.f32 %v113, %v65
    %v115 = vadd.f32 %v114, %v73
    %v116 = vadd.f32 %v115, %v81
    %v117 = vadd.f32 %v116, %v89
    %v118 = vadd.f32 %v117, %v97
    %v119 = vadd.f32 %v118, %v105
    %v120 = vadd.f32 %v50, %v58
    %v121 = vadd.f32 %v120, %v66
    %v122 = vadd.f32 %v121, %v74
    %v123 = vadd.f32 %v122, %v82
    %v124 = vadd.f32 %v123, %v90
    %v125 = vadd.f32 %v124, %v98
    %v126 = vadd.f32 %v125, %v106
    %v127 = vadd.f32 %v51, %v59
    %v128 = vadd.f32 %v127, %v67
    %v129 = vadd.f32 %v128, %v75
    %v130 = vadd.f32 %v129, %v83
    %v131 = vadd.f32 %v130, %v91
    %v132 = vadd.f32 %v131, %v99
    %v133 = vadd.f32 %v132, %v107
    %v134 = vadd.f32 %v52, %v60
    %v135 = vadd.f32 %v134, %v68
    %v136 = vadd.f32 %v135, %v76
    %v137 = vadd.f32 %v136, %v84
    %v138 = vadd.f32 %v137, %v92
    %v139 = vadd.f32 %v138, %v100
    %v140 = vadd.f32 %v139, %v108
    %v141 = vadd.f32 %v53, %v61
    %v142 = vadd.f32 %v141, %v69
    %v143 = vadd.f32 %v142, %v77
    %v144 = vadd.f32 %v143, %v85
    %v145 = vadd.f32 %v144, %v93
    %v146 = vadd.f32 %v145, %v101
    %v147 = vadd.f32 %v146, %v109
    %v148 = vadd.f32 %v54, %v62
    %v149 = vadd.f32 %v148, %v70
    %v150 = vadd.f32 %v149, %v78
    %v151 = vadd.f32 %v150, %v86
    %v152 = vadd.f32 %v151, %v94
    %v153 = vadd.f32 %v152, %v102
    %v154 = vadd.f32 %v153, %v110
    %v155 = vadd.f32 %v55, %v63
    %v156 = vadd.f32 %v155, %v71
    %v157 = vadd.f32 %v156, %v79
    %v158 = vadd.f32 %v157, %v87
    %v159 = vadd.f32 %v158, %v95
    %v160 = vadd.f32 %v159, %v103
    %v161 = vadd.f32 %v160, %v111
    %v162 = vadd.f32 %v56, %v64
    %v163 = vadd.f32 %v162, %v72
    %v164 = vadd.f32 %v163, %v80
    %v165 = vadd.f32 %v164, %v88
    %v166 = vadd.f32 %v165, %v96
    %v167 = vadd.f32 %v166, %v104
    %v168 = vadd.f32 %v167, %v112
    %v169 = vmul.f32 %v119, 0.125
    %v170 = vmul.f32 %v126, 0.125
    %v171 = vmul.f32 %v133, 0.125
    %v172 = vmul.f32 %v140, 0.125
    %v173 = vmul.f32 %v147, 0.125
    %v174 = vmul.f32 %v154, 0.125
    %v175 = vmul.f32 %v161, 0.125
    %v176 = vmul.f32 %v168, 0.125
    %v177 = vld [vmem:[%s1] sm:$0xff]
    %v178 = vld [vmem:[%s1 + $0x8] sm:$0xff]
    %v179 = vld [vmem:[%s1 + $0x10] sm:$0xff]
    %v180 = vld [vmem:[%s1 + $0x18] sm:$0xff]
    %v181 = vld [vmem:[%s1 + $0x20] sm:$0xff]
    %v182 = vld [vmem:[%s1 + $0x28] sm:$0xff]
    %v183 = vld [vmem:[%s1 + $0x30] sm:$0xff]
    %v184 = vld [vmem:[%s1 + $0x38] sm:$0xff]
    %v185 = vld [vmem:[%s2] sm:$0xff]
    %v186 = vld [vmem:[%s2 + $0x8] sm:$0xff]
    %v187 = vld [vmem:[%s2 + $0x10] sm:$0xff]
    %v188 = vld [vmem:[%s2 + $0x18] sm:$0xff]
    %v189 = vld [vmem:[%s2 + $0x20] sm:$0xff]
    %v190 = vld [vmem:[%s2 + $0x28] sm:$0xff]
    %v191 = vld [vmem:[%s2 + $0x30] sm:$0xff]
    %v192 = vld [vmem:[%s2 + $0x38] sm:$0xff]
    %194 = vset.pattern.permute.xlu0 0
    %195 = vperm.xlu0 %194, %v185
    %v196 = vpop.permute.xlu0 %195
    %199 = vset.pattern.permute.xlu0 0
    %200 = vperm.xlu0 %199, %v186
    %v201 = vpop.permute.xlu0 %200
    %204 = vset.pattern.permute.xlu0 0
    %205 = vperm.xlu0 %204, %v187
    %v206 = vpop.permute.xlu0 %205
    %209 = vset.pattern.permute.xlu0 0
    %210 = vperm.xlu0 %209, %v188
    %v211 = vpop.permute.xlu0 %210
    %214 = vset.pattern.permute.xlu0 0
    %215 = vperm.xlu0 %214, %v189
    %v216 = vpop.permute.xlu0 %215
    %219 = vset.pattern.permute.xlu0 0
    %220 = vperm.xlu0 %219, %v190
    %v221 = vpop.permute.xlu0 %220
    %224 = vset.pattern.permute.xlu0 0
    %225 = vperm.xlu0 %224, %v191
    %v226 = vpop.permute.xlu0 %225
    %229 = vset.pattern.permute.xlu0 0
    %230 = vperm.xlu0 %229, %v192
    %v231 = vpop.permute.xlu0 %230
    %vm233 = vcmask 523264
    %v235 = vsel %vm233, %v177, 0
    %v238 = vsel %vm233, %v178, 0
    %v241 = vsel %vm233, %v179, 0
    %v244 = vsel %vm233, %v180, 0
    %v247 = vsel %vm233, %v181, 0
    %v250 = vsel %vm233, %v182, 0
    %v253 = vsel %vm233, %v183, 0
    %v256 = vsel %vm233, %v184, 0
    %258 = vmatprep.subr.mxu0 0.0
    %259 = vmatpush1.msra.mxu0 %v169
    %260 = vmatprep.subr.mxu0 0.0
    %261 = vmatpush1.msra.mxu0 %v170
    %262 = vmatprep.subr.mxu0 0.0
    %263 = vmatpush1.msra.mxu0 %v171
    %264 = vmatprep.subr.mxu0 0.0
    %265 = vmatpush1.msra.mxu0 %v172
    %266 = vmatprep.subr.mxu0 0.0
    %267 = vmatpush1.msra.mxu0 %v173
    %268 = vmatprep.subr.mxu0 0.0
    %269 = vmatpush1.msra.mxu0 %v174
    %270 = vmatprep.subr.mxu0 0.0
    %271 = vmatpush1.msra.mxu0 %v175
    %272 = vmatprep.subr.mxu0 0.0
    %273 = vmatpush1.msra.mxu0 %v176
    %274 = vmatprep.subr.mxu0 0.0
    %275 = vmatpush1.msra.mxu0 0.0
    %276 = vmatprep.subr.mxu0 0.0
    %277 = vmatpush1.msra.mxu0 0.0
    %278 = vmatprep.subr.mxu0 0.0
    %279 = vmatpush1.msra.mxu0 0.0
    %280 = vmatprep.subr.mxu0 0.0
    %281 = vmatpush1.msra.mxu0 0.0
    %282 = vmatprep.subr.mxu0 0.0
    %283 = vmatpush1.msra.mxu0 0.0
    %284 = vmatprep.subr.mxu0 0.0
    %285 = vmatpush1.msra.mxu0 0.0
    %286 = vmatprep.subr.mxu0 0.0
    %287 = vmatpush1.msra.mxu0 0.0
    %288 = vmatprep.subr.mxu0 0.0
    %289 = vmatpush1.msra.mxu0 0.0
    %290 = vmatprep.subr.mxu0 0.0
    %291 = vmatpush1.msra.mxu0 0.0
    %292 = vmatprep.subr.mxu0 0.0
    %293 = vmatpush1.msra.mxu0 0.0
    %294 = vmatprep.subr.mxu0 0.0
    %295 = vmatpush1.msra.mxu0 0.0
    %296 = vmatprep.subr.mxu0 0.0
    %297 = vmatpush1.msra.mxu0 0.0
    %298 = vmatprep.subr.mxu0 0.0
    %299 = vmatpush1.msra.mxu0 0.0
    %300 = vmatprep.subr.mxu0 0.0
    %301 = vmatpush1.msra.mxu0 0.0
    %302 = vmatprep.subr.mxu0 0.0
    %303 = vmatpush1.msra.mxu0 0.0
    %304 = vmatprep.subr.mxu0 0.0
    %305 = vmatpush1.msra.mxu0 0.0
    %306 = vmatprep.subr.mxu0 0.0
    %307 = vmatpush1.msra.mxu0 0.0
    %308 = vmatprep.subr.mxu0 0.0
    %309 = vmatpush1.msra.mxu0 0.0
    %310 = vmatprep.subr.mxu0 0.0
    %311 = vmatpush1.msra.mxu0 0.0
    %312 = vmatprep.subr.mxu0 0.0
    %313 = vmatpush1.msra.mxu0 0.0
    %314 = vmatprep.subr.mxu0 0.0
    %315 = vmatpush1.msra.mxu0 0.0
    %316 = vmatprep.subr.mxu0 0.0
    %317 = vmatpush1.msra.mxu0 0.0
    %318 = vmatprep.subr.mxu0 0.0
    %319 = vmatpush1.msra.mxu0 0.0
    %320 = vmatprep.subr.mxu0 0.0
    %321 = vmatpush1.msra.mxu0 0.0
    %322 = vmatprep.mubr.f32.mxu0 0.0
    %323 = vmatmul.mubr.f32.gmra.mrb[0].mxu0 %v235
    %v324 = vpop.f32.mrb[0].mxu0
    %v325 = vadd.f32 %v196, %v324
    %v326 = vpop.f32.mrb[0].mxu0
    %327 = vmatprep.mubr.f32.mxu0 0.0
    %328 = vmatmul.mubr.f32.gmra.mrb[0].mxu0 %v238
    %v329 = vpop.f32.mrb[0].mxu0
    %v330 = vadd.f32 %v201, %v329
    %v331 = vpop.f32.mrb[0].mxu0
    %332 = vmatprep.mubr.f32.mxu0 0.0
    %333 = vmatmul.mubr.f32.gmra.mrb[0].mxu0 %v241
    %v334 = vpop.f32.mrb[0].mxu0
    %v335 = vadd.f32 %v206, %v334
    %v336 = vpop.f32.mrb[0].mxu0
    %337 = vmatprep.mubr.f32.mxu0 0.0
    %338 = vmatmul.mubr.f32.gmra.mrb[0].mxu0 %v244
    %v339 = vpop.f32.mrb[0].mxu0
    %v340 = vadd.f32 %v211, %v339
    %v341 = vpop.f32.mrb[0].mxu0
    %342 = vmatprep.mubr.f32.mxu0 0.0
    %343 = vmatmul.mubr.f32.gmra.mrb[0].mxu0 %v247
    %v344 = vpop.f32.mrb[0].mxu0
    %v345 = vadd.f32 %v216, %v344
    %v346 = vpop.f32.mrb[0].mxu0
    %347 = vmatprep.mubr.f32.mxu0 0.0
    %348 = vmatmul.mubr.f32.gmra.mrb[0].mxu0 %v250
    %v349 = vpop.f32.mrb[0].mxu0
    %v350 = vadd.f32 %v221, %v349
    %v351 = vpop.f32.mrb[0].mxu0
    %352 = vmatprep.mubr.f32.mxu0 0.0
    %353 = vmatmul.mubr.f32.gmra.mrb[0].mxu0 %v253
    %v354 = vpop.f32.mrb[0].mxu0
    %v355 = vadd.f32 %v226, %v354
    %v356 = vpop.f32.mrb[0].mxu0
    %357 = vmatprep.mubr.f32.mxu0 0.0
    %358 = vmatmul.mubr.f32.gmra.mrb[0].mxu0 %v256
    %v359 = vpop.f32.mrb[0].mxu0
    %v360 = vadd.f32 %v231, %v359
    %v361 = vpop.f32.mrb[0].mxu0
    %362 = vdwg.mxu0
    %v363 = vmax.f32 %v325, %v345
    %v364 = vmax.f32 %v330, %v350
    %v365 = vmax.f32 %v335, %v355
    %v366 = vmax.f32 %v340, %v360
    %v367 = vmax.f32 %v363, %v364
    %v368 = vmax.f32 %v365, %v366
    %v369 = vmax.f32 %v367, %v368
    %v370 = vrot.slane %v369, 4
    %v371 = vmax.f32 %v369, %v370
    %v372 = vrot.slane %v371, 2
    %v373 = vmax.f32 %v371, %v372
    %v374 = vrot.slane %v373, 1
    %v375 = vmax.f32 %v373, %v374
    %v376 = vsub.f32 %v325, %v375
    %v377 = vsub.f32 %v330, %v375
    %v378 = vsub.f32 %v335, %v375
    %v379 = vsub.f32 %v340, %v375
    %v380 = vsub.f32 %v345, %v375
    %v381 = vsub.f32 %v350, %v375
    %v382 = vsub.f32 %v355, %v375
    %v383 = vsub.f32 %v360, %v375
    %v384 = vmul.f32 %v376, 1.442695
    %v385 = vpow.pop %v384
    %v386 = vmul.f32 %v377, 1.442695
    %v387 = vpow.pop %v386
    %v388 = vmul.f32 %v378, 1.442695
    %v389 = vpow.pop %v388
    %v390 = vmul.f32 %v379, 1.442695
    %v391 = vpow.pop %v390
    %v392 = vmul.f32 %v380, 1.442695
    %v393 = vpow.pop %v392
    %v394 = vmul.f32 %v381, 1.442695
    %v395 = vpow.pop %v394
    %v396 = vmul.f32 %v382, 1.442695
    %v397 = vpow.pop %v396
    %v398 = vmul.f32 %v383, 1.442695
    %v399 = vpow.pop %v398
    %v400 = vadd.f32 %v385, %v387
    %v401 = vadd.f32 %v400, %v389
    %v402 = vadd.f32 %v401, %v391
    %v403 = vadd.f32 %v402, %v393
    %v404 = vadd.f32 %v403, %v395
    %v405 = vadd.f32 %v404, %v397
    %v406 = vadd.f32 %v405, %v399
    %v407 = vrot.slane %v406, 4
    %v408 = vadd.f32 %v406, %v407
    %v409 = vrot.slane %v408, 2
    %v410 = vadd.f32 %v408, %v409
    %v411 = vrot.slane %v410, 1
    %v412 = vadd.f32 %v410, %v411
    %v413 = vrcp.pop %v412
    %v414 = vmul.f32 %v385, %v413
    %v415 = vmul.f32 %v387, %v413
    %v416 = vmul.f32 %v389, %v413
    %v417 = vmul.f32 %v391, %v413
    %v418 = vmul.f32 %v393, %v413
    %v419 = vmul.f32 %v395, %v413
    %v420 = vmul.f32 %v397, %v413
    %v421 = vmul.f32 %v399, %v413
    %v422 = vmul.f32 %v169, %v414
    %v423 = vmul.f32 %v170, %v415
    %v424 = vmul.f32 %v171, %v416
    %v425 = vmul.f32 %v172, %v417
    %v426 = vmul.f32 %v173, %v418
    %v427 = vmul.f32 %v174, %v419
    %v428 = vmul.f32 %v175, %v420
    %v429 = vmul.f32 %v176, %v421
    %v430 = vld [vmem:[%s3] sm:$0xff]
    %v431 = vld [vmem:[%s3 + $0x8] sm:$0xff]
    %v432 = vld [vmem:[%s3 + $0x10] sm:$0xff]
    %v433 = vld [vmem:[%s3 + $0x18] sm:$0xff]
    %v434 = vld [vmem:[%s4] sm:$0xff]
    %v435 = vld [vmem:[%s4 + $0x8] sm:$0xff]
    %v436 = vld [vmem:[%s4 + $0x10] sm:$0xff]
    %v437 = vld [vmem:[%s4 + $0x18] sm:$0xff]
    %439 = vset.pattern.permute.xlu0 0
    %440 = vperm.xlu0 %439, %v434
    %v441 = vpop.permute.xlu0 %440
    %444 = vset.pattern.permute.xlu0 0
    %445 = vperm.xlu0 %444, %v435
    %v446 = vpop.permute.xlu0 %445
    %449 = vset.pattern.permute.xlu0 0
    %450 = vperm.xlu0 %449, %v436
    %v451 = vpop.permute.xlu0 %450
    %454 = vset.pattern.permute.xlu0 0
    %455 = vperm.xlu0 %454, %v437
    %v456 = vpop.permute.xlu0 %455
    %v459 = vsel %vm233, %v430, 0
    %v462 = vsel %vm233, %v431, 0
    %v465 = vsel %vm233, %v432, 0
    %v468 = vsel %vm233, %v433, 0
    %470 = vmatprep.subr.mxu0 0.0
    %471 = vmatpush1.msra.mxu0 %v422
    %472 = vmatprep.subr.mxu0 0.0
    %473 = vmatpush1.msra.mxu0 %v423
    %474 = vmatprep.subr.mxu0 0.0
    %475 = vmatpush1.msra.mxu0 %v424
    %476 = vmatprep.subr.mxu0 0.0
    %477 = vmatpush1.msra.mxu0 %v425
    %478 = vmatprep.subr.mxu0 0.0
    %479 = vmatpush1.msra.mxu0 %v426
    %480 = vmatprep.subr.mxu0 0.0
    %481 = vmatpush1.msra.mxu0 %v427
    %482 = vmatprep.subr.mxu0 0.0
    %483 = vmatpush1.msra.mxu0 %v428
    %484 = vmatprep.subr.mxu0 0.0
    %485 = vmatpush1.msra.mxu0 %v429
    %486 = vmatprep.subr.mxu0 0.0
    %487 = vmatpush1.msra.mxu0 0.0
    %488 = vmatprep.subr.mxu0 0.0
    %489 = vmatpush1.msra.mxu0 0.0
    %490 = vmatprep.subr.mxu0 0.0
    %491 = vmatpush1.msra.mxu0 0.0
    %492 = vmatprep.subr.mxu0 0.0
    %493 = vmatpush1.msra.mxu0 0.0
    %494 = vmatprep.subr.mxu0 0.0
    %495 = vmatpush1.msra.mxu0 0.0
    %496 = vmatprep.subr.mxu0 0.0
    %497 = vmatpush1.msra.mxu0 0.0
    %498 = vmatprep.subr.mxu0 0.0
    %499 = vmatpush1.msra.mxu0 0.0
    %500 = vmatprep.subr.mxu0 0.0
    %501 = vmatpush1.msra.mxu0 0.0
    %502 = vmatprep.subr.mxu0 0.0
    %503 = vmatpush1.msra.mxu0 0.0
    %504 = vmatprep.subr.mxu0 0.0
    %505 = vmatpush1.msra.mxu0 0.0
    %506 = vmatprep.subr.mxu0 0.0
    %507 = vmatpush1.msra.mxu0 0.0
    %508 = vmatprep.subr.mxu0 0.0
    %509 = vmatpush1.msra.mxu0 0.0
    %510 = vmatprep.subr.mxu0 0.0
    %511 = vmatpush1.msra.mxu0 0.0
    %512 = vmatprep.subr.mxu0 0.0
    %513 = vmatpush1.msra.mxu0 0.0
    %514 = vmatprep.subr.mxu0 0.0
    %515 = vmatpush1.msra.mxu0 0.0
    %516 = vmatprep.subr.mxu0 0.0
    %517 = vmatpush1.msra.mxu0 0.0
    %518 = vmatprep.subr.mxu0 0.0
    %519 = vmatpush1.msra.mxu0 0.0
    %520 = vmatprep.subr.mxu0 0.0
    %521 = vmatpush1.msra.mxu0 0.0
    %522 = vmatprep.subr.mxu0 0.0
    %523 = vmatpush1.msra.mxu0 0.0
    %524 = vmatprep.subr.mxu0 0.0
    %525 = vmatpush1.msra.mxu0 0.0
    %526 = vmatprep.subr.mxu0 0.0
    %527 = vmatpush1.msra.mxu0 0.0
    %528 = vmatprep.subr.mxu0 0.0
    %529 = vmatpush1.msra.mxu0 0.0
    %530 = vmatprep.subr.mxu0 0.0
    %531 = vmatpush1.msra.mxu0 0.0
    %532 = vmatprep.subr.mxu0 0.0
    %533 = vmatpush1.msra.mxu0 0.0
    %534 = vmatprep.mubr.f32.mxu0 0.0
    %535 = vmatmul.mubr.f32.gmra.mrb[0].mxu0 %v459
    %v536 = vpop.f32.mrb[0].mxu0
    %v537 = vadd.f32 %v441, %v536
    %v538 = vpop.f32.mrb[0].mxu0
    %539 = vmatprep.mubr.f32.mxu0 0.0
    %540 = vmatmul.mubr.f32.gmra.mrb[0].mxu0 %v462
    %v541 = vpop.f32.mrb[0].mxu0
    %v542 = vadd.f32 %v446, %v541
    %v543 = vpop.f32.mrb[0].mxu0
    %544 = vmatprep.mubr.f32.mxu0 0.0
    %545 = vmatmul.mubr.f32.gmra.mrb[0].mxu0 %v465
    %v546 = vpop.f32.mrb[0].mxu0
    %v547 = vadd.f32 %v451, %v546
    %v548 = vpop.f32.mrb[0].mxu0
    %549 = vmatprep.mubr.f32.mxu0 0.0
    %550 = vmatmul.mubr.f32.gmra.mrb[0].mxu0 %v468
    %v551 = vpop.f32.mrb[0].mxu0
    %v552 = vadd.f32 %v456, %v551
    %v553 = vpop.f32.mrb[0].mxu0
    %554 = vdwg.mxu0
    %v555 = vmax.f32 %v537, 0.0
    %v556 = vmax.f32 %v542, 0.0
    %v557 = vmax.f32 %v547, 0.0
    %v558 = vmax.f32 %v552, 0.0
    %v559 = vld [vmem:[%s5] sm:$0xff]
    %v560 = vld [vmem:[%s5 + $0x8] sm:$0xff]
    %v561 = vld [vmem:[%s5 + $0x10] sm:$0xff]
    %v562 = vld [vmem:[%s5 + $0x18] sm:$0xff]
    %v563 = vld [vmem:[%s6] sm:$0xff]
    %v564 = vld [vmem:[%s6 + $0x8] sm:$0xff]
    %v565 = vld [vmem:[%s6 + $0x10] sm:$0xff]
    %v566 = vld [vmem:[%s6 + $0x18] sm:$0xff]
    %568 = vset.pattern.permute.xlu0 0
    %569 = vperm.xlu0 %568, %v563
    %v570 = vpop.permute.xlu0 %569
    %573 = vset.pattern.permute.xlu0 0
    %574 = vperm.xlu0 %573, %v564
    %v575 = vpop.permute.xlu0 %574
    %578 = vset.pattern.permute.xlu0 0
    %579 = vperm.xlu0 %578, %v565
    %v580 = vpop.permute.xlu0 %579
    %583 = vset.pattern.permute.xlu0 0
    %584 = vperm.xlu0 %583, %v566
    %v585 = vpop.permute.xlu0 %584
    %vm587 = vcmask 261120
    %v589 = vsel %vm587, %v559, 0
    %v592 = vsel %vm587, %v560, 0
    %v595 = vsel %vm587, %v561, 0
    %v598 = vsel %vm587, %v562, 0
    %600 = vmatprep.subr.mxu0 0.0
    %601 = vmatpush1.msra.mxu0 %v555
    %602 = vmatprep.subr.mxu0 0.0
    %603 = vmatpush1.msra.mxu0 %v556
    %604 = vmatprep.subr.mxu0 0.0
    %605 = vmatpush1.msra.mxu0 %v557
    %606 = vmatprep.subr.mxu0 0.0
    %607 = vmatpush1.msra.mxu0 %v558
    %608 = vmatprep.subr.mxu0 0.0
    %609 = vmatpush1.msra.mxu0 0.0
    %610 = vmatprep.subr.mxu0 0.0
    %611 = vmatpush1.msra.mxu0 0.0
    %612 = vmatprep.subr.mxu0 0.0
    %613 = vmatpush1.msra.mxu0 0.0
    %614 = vmatprep.subr.mxu0 0.0
    %615 = vmatpush1.msra.mxu0 0.0
    %616 = vmatprep.subr.mxu0 0.0
    %617 = vmatpush1.msra.mxu0 0.0
    %618 = vmatprep.subr.mxu0 0.0
    %619 = vmatpush1.msra.mxu0 0.0
    %620 = vmatprep.subr.mxu0 0.0
    %621 = vmatpush1.msra.mxu0 0.0
    %622 = vmatprep.subr.mxu0 0.0
    %623 = vmatpush1.msra.mxu0 0.0
    %624 = vmatprep.subr.mxu0 0.0
    %625 = vmatpush1.msra.mxu0 0.0
    %626 = vmatprep.subr.mxu0 0.0
    %627 = vmatpush1.msra.mxu0 0.0
    %628 = vmatprep.subr.mxu0 0.0
    %629 = vmatpush1.msra.mxu0 0.0
    %630 = vmatprep.subr.mxu0 0.0
    %631 = vmatpush1.msra.mxu0 0.0
    %632 = vmatprep.subr.mxu0 0.0
    %633 = vmatpush1.msra.mxu0 0.0
    %634 = vmatprep.subr.mxu0 0.0
    %635 = vmatpush1.msra.mxu0 0.0
    %636 = vmatprep.subr.mxu0 0.0
    %637 = vmatpush1.msra.mxu0 0.0
    %638 = vmatprep.subr.mxu0 0.0
    %639 = vmatpush1.msra.mxu0 0.0
    %640 = vmatprep.subr.mxu0 0.0
    %641 = vmatpush1.msra.mxu0 0.0
    %642 = vmatprep.subr.mxu0 0.0
    %643 = vmatpush1.msra.mxu0 0.0
    %644 = vmatprep.subr.mxu0 0.0
    %645 = vmatpush1.msra.mxu0 0.0
    %646 = vmatprep.subr.mxu0 0.0
    %647 = vmatpush1.msra.mxu0 0.0
    %648 = vmatprep.subr.mxu0 0.0
    %649 = vmatpush1.msra.mxu0 0.0
    %650 = vmatprep.subr.mxu0 0.0
    %651 = vmatpush1.msra.mxu0 0.0
    %652 = vmatprep.subr.mxu0 0.0
    %653 = vmatpush1.msra.mxu0 0.0
    %654 = vmatprep.subr.mxu0 0.0
    %655 = vmatpush1.msra.mxu0 0.0
    %656 = vmatprep.subr.mxu0 0.0
    %657 = vmatpush1.msra.mxu0 0.0
    %658 = vmatprep.subr.mxu0 0.0
    %659 = vmatpush1.msra.mxu0 0.0
    %660 = vmatprep.subr.mxu0 0.0
    %661 = vmatpush1.msra.mxu0 0.0
    %662 = vmatprep.subr.mxu0 0.0
    %663 = vmatpush1.msra.mxu0 0.0
    %664 = vmatprep.mubr.f32.mxu0 0.0
    %665 = vmatmul.mubr.f32.gmra.mrb[0].mxu0 %v589
    %v666 = vpop.f32.mrb[0].mxu0
    %v667 = vadd.f32 %v570, %v666
    %v668 = vpop.f32.mrb[0].mxu0
    %669 = vmatprep.mubr.f32.mxu0 0.0
    %670 = vmatmul.mubr.f32.gmra.mrb[0].mxu0 %v592
    %v671 = vpop.f32.mrb[0].mxu0
    %v672 = vadd.f32 %v575, %v671
    %v673 = vpop.f32.mrb[0].mxu0
    %674 = vmatprep.mubr.f32.mxu0 0.0
    %675 = vmatmul.mubr.f32.gmra.mrb[0].mxu0 %v595
    %v676 = vpop.f32.mrb[0].mxu0
    %v677 = vadd.f32 %v580, %v676
    %v678 = vpop.f32.mrb[0].mxu0
    %679 = vmatprep.mubr.f32.mxu0 0.0
    %680 = vmatmul.mubr.f32.gmra.mrb[0].mxu0 %v598
    %v681 = vpop.f32.mrb[0].mxu0
    %v682 = vadd.f32 %v585, %v681
    %v683 = vpop.f32.mrb[0].mxu0
    %684 = vdwg.mxu0
    %v685 = vmax.f32 %v667, 0.0
    %v686 = vmax.f32 %v672, 0.0
    %v687 = vmax.f32 %v677, 0.0
    %v688 = vmax.f32 %v682, 0.0
    %s689 = scalar_lea.vmem %s5, 32
    %v690 = vld [vmem:[%s689] sm:$0xff]
    %v691 = vld [vmem:[%s689 + $0x8] sm:$0xff]
    %v692 = vld [vmem:[%s689 + $0x10] sm:$0xff]
    %v693 = vld [vmem:[%s689 + $0x18] sm:$0xff]
    %s694 = scalar_lea.vmem %s6, 32
    %v695 = vld [vmem:[%s694] sm:$0xff]
    %v696 = vld [vmem:[%s694 + $0x8] sm:$0xff]
    %v697 = vld [vmem:[%s694 + $0x10] sm:$0xff]
    %v698 = vld [vmem:[%s694 + $0x18] sm:$0xff]
    %700 = vset.pattern.permute.xlu0 0
    %701 = vperm.xlu0 %700, %v695
    %v702 = vpop.permute.xlu0 %701
    %705 = vset.pattern.permute.xlu0 0
    %706 = vperm.xlu0 %705, %v696
    %v707 = vpop.permute.xlu0 %706
    %710 = vset.pattern.permute.xlu0 0
    %711 = vperm.xlu0 %710, %v697
    %v712 = vpop.permute.xlu0 %711
    %715 = vset.pattern.permute.xlu0 0
    %716 = vperm.xlu0 %715, %v698
    %v717 = vpop.permute.xlu0 %716
    %v720 = vsel %vm587, %v690, 0
    %v723 = vsel %vm587, %v691, 0
    %v726 = vsel %vm587, %v692, 0
    %v729 = vsel %vm587, %v693, 0
    %731 = vmatprep.subr.mxu0 0.0
    %732 = vmatpush1.msra.mxu0 %v685
    %733 = vmatprep.subr.mxu0 0.0
    %734 = vmatpush1.msra.mxu0 %v686
    %735 = vmatprep.subr.mxu0 0.0
    %736 = vmatpush1.msra.mxu0 %v687
    %737 = vmatprep.subr.mxu0 0.0
    %738 = vmatpush1.msra.mxu0 %v688
    %739 = vmatprep.subr.mxu0 0.0
    %740 = vmatpush1.msra.mxu0 0.0
    %741 = vmatprep.subr.mxu0 0.0
    %742 = vmatpush1.msra.mxu0 0.0
    %743 = vmatprep.subr.mxu0 0.0
    %744 = vmatpush1.msra.mxu0 0.0
    %745 = vmatprep.subr.mxu0 0.0
    %746 = vmatpush1.msra.mxu0 0.0
    %747 = vmatprep.subr.mxu0 0.0
    %748 = vmatpush1.msra.mxu0 0.0
    %749 = vmatprep.subr.mxu0 0.0
    %750 = vmatpush1.msra.mxu0 0.0
    %751 = vmatprep.subr.mxu0 0.0
    %752 = vmatpush1.msra.mxu0 0.0
    %753 = vmatprep.subr.mxu0 0.0
    %754 = vmatpush1.msra.mxu0 0.0
    %755 = vmatprep.subr.mxu0 0.0
    %756 = vmatpush1.msra.mxu0 0.0
    %757 = vmatprep.subr.mxu0 0.0
    %758 = vmatpush1.msra.mxu0 0.0
    %759 = vmatprep.subr.mxu0 0.0
    %760 = vmatpush1.msra.mxu0 0.0
    %761 = vmatprep.subr.mxu0 0.0
    %762 = vmatpush1.msra.mxu0 0.0
    %763 = vmatprep.subr.mxu0 0.0
    %764 = vmatpush1.msra.mxu0 0.0
    %765 = vmatprep.subr.mxu0 0.0
    %766 = vmatpush1.msra.mxu0 0.0
    %767 = vmatprep.subr.mxu0 0.0
    %768 = vmatpush1.msra.mxu0 0.0
    %769 = vmatprep.subr.mxu0 0.0
    %770 = vmatpush1.msra.mxu0 0.0
    %771 = vmatprep.subr.mxu0 0.0
    %772 = vmatpush1.msra.mxu0 0.0
    %773 = vmatprep.subr.mxu0 0.0
    %774 = vmatpush1.msra.mxu0 0.0
    %775 = vmatprep.subr.mxu0 0.0
    %776 = vmatpush1.msra.mxu0 0.0
    %777 = vmatprep.subr.mxu0 0.0
    %778 = vmatpush1.msra.mxu0 0.0
    %779 = vmatprep.subr.mxu0 0.0
    %780 = vmatpush1.msra.mxu0 0.0
    %781 = vmatprep.subr.mxu0 0.0
    %782 = vmatpush1.msra.mxu0 0.0
    %783 = vmatprep.subr.mxu0 0.0
    %784 = vmatpush1.msra.mxu0 0.0
    %785 = vmatprep.subr.mxu0 0.0
    %786 = vmatpush1.msra.mxu0 0.0
    %787 = vmatprep.subr.mxu0 0.0
    %788 = vmatpush1.msra.mxu0 0.0
    %789 = vmatprep.subr.mxu0 0.0
    %790 = vmatpush1.msra.mxu0 0.0
    %791 = vmatprep.subr.mxu0 0.0
    %792 = vmatpush1.msra.mxu0 0.0
    %793 = vmatprep.subr.mxu0 0.0
    %794 = vmatpush1.msra.mxu0 0.0
    %795 = vmatprep.mubr.f32.mxu0 0.0
    %796 = vmatmul.mubr.f32.gmra.mrb[0].mxu0 %v720
    %v797 = vpop.f32.mrb[0].mxu0
    %v798 = vadd.f32 %v702, %v797
    %v799 = vpop.f32.mrb[0].mxu0
    %800 = vmatprep.mubr.f32.mxu0 0.0
    %801 = vmatmul.mubr.f32.gmra.mrb[0].mxu0 %v723
    %v802 = vpop.f32.mrb[0].mxu0
    %v803 = vadd.f32 %v707, %v802
    %v804 = vpop.f32.mrb[0].mxu0
    %805 = vmatprep.mubr.f32.mxu0 0.0
    %806 = vmatmul.mubr.f32.gmra.mrb[0].mxu0 %v726
    %v807 = vpop.f32.mrb[0].mxu0
    %v808 = vadd.f32 %v712, %v807
    %v809 = vpop.f32.mrb[0].mxu0
    %810 = vmatprep.mubr.f32.mxu0 0.0
    %811 = vmatmul.mubr.f32.gmra.mrb[0].mxu0 %v729
    %v812 = vpop.f32.mrb[0].mxu0
    %v813 = vadd.f32 %v717, %v812
    %v814 = vpop.f32.mrb[0].mxu0
    %815 = vdwg.mxu0
    %v816 = vmax.f32 %v798, 0.0
    %v817 = vmax.f32 %v803, 0.0
    %v818 = vmax.f32 %v808, 0.0
    %v819 = vmax.f32 %v813, 0.0
    %v820 = vld [vmem:[%s7] sm:$0x1]
    %v821 = vld [vmem:[#allocation2] sm:$0x1]
    %823 = vset.pattern.permute.xlu0 0
    %824 = vperm.xlu0 %823, %v821
    %v825 = vpop.permute.xlu0 %824
    %v827 = vlaneseq
    %v828 = vshrl.u32 %v827, 7
    %v829 = vsub.s32 0, %v828
    %v830 = vrot.slane %v825, %v829
    %v832 = vsel %vm587, %v820, 0
    %834 = vmatprep.subr.mxu0 0.0
    %835 = vmatpush1.msra.mxu0 %v816
    %836 = vmatprep.subr.mxu0 0.0
    %837 = vmatpush1.msra.mxu0 %v817
    %838 = vmatprep.subr.mxu0 0.0
    %839 = vmatpush1.msra.mxu0 %v818
    %840 = vmatprep.subr.mxu0 0.0
    %841 = vmatpush1.msra.mxu0 %v819
    %842 = vmatprep.subr.mxu0 0.0
    %843 = vmatpush1.msra.mxu0 0.0
    %844 = vmatprep.subr.mxu0 0.0
    %845 = vmatpush1.msra.mxu0 0.0
    %846 = vmatprep.subr.mxu0 0.0
    %847 = vmatpush1.msra.mxu0 0.0
    %848 = vmatprep.subr.mxu0 0.0
    %849 = vmatpush1.msra.mxu0 0.0
    %850 = vmatprep.subr.mxu0 0.0
    %851 = vmatpush1.msra.mxu0 0.0
    %852 = vmatprep.subr.mxu0 0.0
    %853 = vmatpush1.msra.mxu0 0.0
    %854 = vmatprep.subr.mxu0 0.0
    %855 = vmatpush1.msra.mxu0 0.0
    %856 = vmatprep.subr.mxu0 0.0
    %857 = vmatpush1.msra.mxu0 0.0
    %858 = vmatprep.subr.mxu0 0.0
    %859 = vmatpush1.msra.mxu0 0.0
    %860 = vmatprep.subr.mxu0 0.0
    %861 = vmatpush1.msra.mxu0 0.0
    %862 = vmatprep.subr.mxu0 0.0
    %863 = vmatpush1.msra.mxu0 0.0
    %864 = vmatprep.subr.mxu0 0.0
    %865 = vmatpush1.msra.mxu0 0.0
    %866 = vmatprep.subr.mxu0 0.0
    %867 = vmatpush1.msra.mxu0 0.0
    %868 = vmatprep.subr.mxu0 0.0
    %869 = vmatpush1.msra.mxu0 0.0
    %870 = vmatprep.subr.mxu0 0.0
    %871 = vmatpush1.msra.mxu0 0.0
    %872 = vmatprep.subr.mxu0 0.0
    %873 = vmatpush1.msra.mxu0 0.0
    %874 = vmatprep.subr.mxu0 0.0
    %875 = vmatpush1.msra.mxu0 0.0
    %876 = vmatprep.subr.mxu0 0.0
    %877 = vmatpush1.msra.mxu0 0.0
    %878 = vmatprep.subr.mxu0 0.0
    %879 = vmatpush1.msra.mxu0 0.0
    %880 = vmatprep.subr.mxu0 0.0
    %881 = vmatpush1.msra.mxu0 0.0
    %882 = vmatprep.subr.mxu0 0.0
    %883 = vmatpush1.msra.mxu0 0.0
    %884 = vmatprep.subr.mxu0 0.0
    %885 = vmatpush1.msra.mxu0 0.0
    %886 = vmatprep.subr.mxu0 0.0
    %887 = vmatpush1.msra.mxu0 0.0
    %888 = vmatprep.subr.mxu0 0.0
    %889 = vmatpush1.msra.mxu0 0.0
    %890 = vmatprep.subr.mxu0 0.0
    %891 = vmatpush1.msra.mxu0 0.0
    %892 = vmatprep.subr.mxu0 0.0
    %893 = vmatpush1.msra.mxu0 0.0
    %894 = vmatprep.subr.mxu0 0.0
    %895 = vmatpush1.msra.mxu0 0.0
    %896 = vmatprep.subr.mxu0 0.0
    %897 = vmatpush1.msra.mxu0 0.0
    %898 = vmatprep.mubr.f32.mxu0 0.0
    %899 = vmatmul.mubr.f32.gmra.mrb[0].mxu0 %v832
    %v900 = vpop.f32.mrb[0].mxu0
    %v901 = vadd.f32 %v830, %v900
    %v902 = vpop.f32.mrb[0].mxu0
    %903 = vdwg.mxu0
    %904 = vst [vmem:[#allocation6] sm:$0x1] %v901
    // Predicated region
    $region42: #{tpu_custom_call.1} parent=1 // pred_check
      _
    $region43: #{tpu_custom_call.1} parent=1 // pred_check_branch
      %906 = sbr.rel (0) target = $region45
    $region44: #{tpu_custom_call.1} parent=1 // pred_region
      %s908 = ssub.s32 16, 16
      %909 = vsyncadd [#allocation5], %s908
      %s911 = sshll.u32 [#allocation6], 4
      %s912 = int_to_ptr.vmem [resolvable:$true] %s911
      %914 = dma.vmem_to_hbm [thread:$0]  %s912, 16, %s9, [#allocation5]
    $region45: #{tpu_custom_call.1} parent=1 // pred_fallthru
      _
    // Predicated region
    $region46: #{tpu_custom_call.1} parent=1 // pred_check
      _
    $region47: #{tpu_custom_call.1} parent=1 // pred_check_branch
      %916 = sbr.rel (0) target = $region49
    $region48: #{tpu_custom_call.1} parent=1 // pred_region
      %917 = dma.done [#allocation5], 16
    $region49: #{tpu_custom_call.1} parent=1 // pred_fallthru
      _
    %918 = vsyncpa [#allocation4], 1
    %919 = vsyncpa [#allocation5], 1

</llo_original>
